<compile_context>
chip_gen: v6e
topology: v6e:2x2x1
jax: 0.10.0
libtpu: 0.0.40
codegen_flags: <defaults>
</compile_context>

<pallas_src>
import functools

import jax
import jax.numpy as jnp
from jax.experimental import pallas as pl
from jax.experimental.pallas import tpu as pltpu


def _critic_kernel(s_ref, a_ref, g_ref,
                   w1s_ref, w1a_ref, w1g_ref, b1_ref,
                   w2_ref, b2_ref, w3_ref, b3_ref,
                   o_ref, *, max_horizon):
    """One batch tile of the fused DDPG-critic MLP.

    concat([s, a, g]) @ W1 is computed as s@W1_s + a@W1_a + g@W1_g (MXU
    accumulates, concat is free). Matmuls run in the storage dtype (bf16 by
    default) with f32 accumulation; all elementwise math stays in f32.
    """
    mxu_dtype = w2_ref.dtype

    h1 = jnp.dot(s_ref[...], w1s_ref[...], preferred_element_type=jnp.float32)
    h1 += jnp.dot(a_ref[...], w1a_ref[...], preferred_element_type=jnp.float32)
    h1 += jnp.dot(g_ref[...], w1g_ref[...], preferred_element_type=jnp.float32)
    h1 = jnp.maximum(h1 + b1_ref[...], 0.0)                        # f32 ReLU (VPU)

    h2 = jnp.dot(h1.astype(mxu_dtype), w2_ref[...],
                 preferred_element_type=jnp.float32) + b2_ref[...]
    h2 = jnp.maximum(h2, 0.0)                                      # f32 ReLU (VPU)

    z = jnp.dot(h2.astype(mxu_dtype), w3_ref[...],
                preferred_element_type=jnp.float32) + b3_ref[...]
    q = jax.nn.sigmoid(z)                                          # f32 exp on EUP
    o_ref[...] = (-q * max_horizon).astype(o_ref.dtype)


@functools.partial(jax.jit,
                   static_argnames=("max_horizon", "block_b", "mxu_dtype"))
def critic_forward(state, action, subgoal, params, max_horizon, *,
                   block_b=2048, mxu_dtype=jnp.bfloat16):
    """Run the fused critic MLP.

    state/subgoal: [B, state_dim], action: [B, action_dim] → returns [B, 1] f32.
    """
    w1, b1, w2, b2, w3, b3 = params
    B, state_dim = state.shape
    action_dim = action.shape[1]
    hidden = w2.shape[0]

    # Split W1 rows so the concat folds into the kernel.
    w1s = w1[:state_dim]
    w1a = w1[state_dim:state_dim + action_dim]
    w1g = w1[state_dim + action_dim:]

    # MXU operands in bf16 (halves HBM traffic on the dominant input stream);
    # biases and all elementwise math stay f32.
    s = state.astype(mxu_dtype)
    a = action.astype(mxu_dtype)
    g = subgoal.astype(mxu_dtype)
    w1s, w1a, w1g, w2m, w3m = (t.astype(mxu_dtype) for t in (w1s, w1a, w1g, w2, w3))
    b1f, b2f, b3f = (t.astype(jnp.float32) for t in (b1, b2, b3))

    # Batch tile: big enough to amortize per-step grid overhead; multiple of 8
    # when gridded (small batches use one full-array tile, any size allowed).
    if B <= block_b:
        tb = B
    else:
        tb = max(8, (block_b // 8) * 8)
    n_blocks = pl.cdiv(B, tb)
    padded_b = n_blocks * tb
    if padded_b != B:
        pad = ((0, padded_b - B), (0, 0))
        s, a, g = (jnp.pad(t, pad) for t in (s, a, g))

    def row_spec(d):
        return pl.BlockSpec((tb, d), lambda i: (i, 0))

    def resident_spec(r, c):
        # Tiny weights/biases: same block every grid step → stay resident in VMEM.
        return pl.BlockSpec((r, c), lambda i: (0, 0))

    out = pl.pallas_call(
        functools.partial(_critic_kernel, max_horizon=float(max_horizon)),
        out_shape=jax.ShapeDtypeStruct((padded_b, 1), jnp.float32),
        grid=(n_blocks,),
        in_specs=[
            row_spec(state_dim), row_spec(action_dim), row_spec(state_dim),
            resident_spec(state_dim, hidden), resident_spec(action_dim, hidden),
            resident_spec(state_dim, hidden), resident_spec(1, hidden),
            resident_spec(hidden, hidden), resident_spec(1, hidden),
            resident_spec(hidden, 1), resident_spec(1, 1),
        ],
        out_specs=pl.BlockSpec((tb, 1), lambda i: (i, 0)),
        compiler_params=pltpu.CompilerParams(
            dimension_semantics=("parallel",)),
    )(s, a, g, w1s, w1a, w1g, b1f, w2m, b2f, w3m, b3f)

    return out[:B] if padded_b != B else out


def init_critic_params(key, state_dim, action_dim, hidden_size=64):
    """Deterministic init matching torch.nn.Linear default (uniform +/- 1/sqrt(fan_in)).
    Weights stored as [in_features, out_features]."""
    in_dim = state_dim * 2 + action_dim
    dims = [(in_dim, hidden_size), (hidden_size, hidden_size), (hidden_size, 1)]
    params = []
    for (fan_in, fan_out) in dims:
        key, kw, kb = jax.random.split(key, 3)
        bound = 1.0 / jnp.sqrt(float(fan_in))
        w = jax.random.uniform(kw, (fan_in, fan_out), jnp.float32, -bound, bound)
        b = jax.random.uniform(kb, (1, fan_out), jnp.float32, -bound, bound)
        params += [w, b]
    return tuple(params)


def critic_reference(state, action, subgoal, params, max_horizon,
                     mxu_dtype=jnp.bfloat16):
    """Pure-JAX reference mirroring the kernel's bf16-input / f32-accumulate math."""
    w1, b1, w2, b2, w3, b3 = params
    sd, ad = state.shape[1], action.shape[1]
    cast = lambda t: t.astype(mxu_dtype)
    h1 = (jnp.dot(cast(state), cast(w1[:sd]), preferred_element_type=jnp.float32)
          + jnp.dot(cast(action), cast(w1[sd:sd + ad]), preferred_element_type=jnp.float32)
          + jnp.dot(cast(subgoal), cast(w1[sd + ad:]), preferred_element_type=jnp.float32))
    h1 = jnp.maximum(h1 + b1.astype(jnp.float32), 0.0)
    h2 = jnp.maximum(
        jnp.dot(cast(h1), cast(w2), preferred_element_type=jnp.float32)
        + b2.astype(jnp.float32), 0.0)
    z = jnp.dot(cast(h2), cast(w3), preferred_element_type=jnp.float32) + b3.astype(jnp.float32)
    return -jax.nn.sigmoid(z) * max_horizon


if __name__ == "__main__":
    # Small shapes consistent with the module's forward.
    batch = 8
    state_dim = 12
    action_dim = 8
    hidden = 64
    max_horizon = 10

    key = jax.random.PRNGKey(0)
    kp, ks, ka, kg = jax.random.split(key, 4)

    params = init_critic_params(kp, state_dim, action_dim, hidden)
    state = jax.random.normal(ks, (batch, state_dim), jnp.float32)
    action = jax.random.normal(ka, (batch, action_dim), jnp.float32)
    subgoal = jax.random.normal(kg, (batch, state_dim), jnp.float32)

    out = critic_forward(state, action, subgoal, params, max_horizon)
    out = jax.block_until_ready(out)

    ref = critic_reference(state, action, subgoal, params, max_horizon)
    assert out.shape == (batch, 1)
    assert jnp.allclose(out, ref, atol=1e-3, rtol=1e-3), "mismatch vs reference"

    print("KERNEL_OK")
</pallas_src>

<mosaic_0001>
module attributes {stable_mosaic.version = 11 : i64} {
  func.func @_critic_kernel(%arg0: i32, %arg1: memref<8x12xbf16, #tpu.memory_space<vmem>>, %arg2: memref<8x8xbf16, #tpu.memory_space<vmem>>, %arg3: memref<8x12xbf16, #tpu.memory_space<vmem>>, %arg4: memref<12x64xbf16, #tpu.memory_space<vmem>>, %arg5: memref<8x64xbf16, #tpu.memory_space<vmem>>, %arg6: memref<12x64xbf16, #tpu.memory_space<vmem>>, %arg7: memref<1x64xf32, #tpu.memory_space<vmem>>, %arg8: memref<64x64xbf16, #tpu.memory_space<vmem>>, %arg9: memref<1x64xf32, #tpu.memory_space<vmem>>, %arg10: memref<64x1xbf16, #tpu.memory_space<vmem>>, %arg11: memref<1x1xf32, #tpu.memory_space<vmem>>, %arg12: memref<8x1xf32, #tpu.memory_space<vmem>>) attributes {dimension_semantics = [#tpu.dimension_semantics<parallel>], iteration_bounds = array<i64: 1>, scalar_prefetch = 0 : i64, scratch_operands = 0 : i64, tpu.core_type = #tpu.core_type<tc>, window_params = [{transform_indices = @transform_0, window_bounds = array<i64: 8, 12>}, {transform_indices = @transform_1, window_bounds = array<i64: 8, 8>}, {transform_indices = @transform_2, window_bounds = array<i64: 8, 12>}, {pipeline_mode = #tpu.pipeline_mode<synchronous>, transform_indices = @transform_3, window_bounds = array<i64: 12, 64>}, {pipeline_mode = #tpu.pipeline_mode<synchronous>, transform_indices = @transform_4, window_bounds = array<i64: 8, 64>}, {pipeline_mode = #tpu.pipeline_mode<synchronous>, transform_indices = @transform_5, window_bounds = array<i64: 12, 64>}, {pipeline_mode = #tpu.pipeline_mode<synchronous>, transform_indices = @transform_6, window_bounds = array<i64: 1, 64>}, {pipeline_mode = #tpu.pipeline_mode<synchronous>, transform_indices = @transform_7, window_bounds = array<i64: 64, 64>}, {pipeline_mode = #tpu.pipeline_mode<synchronous>, transform_indices = @transform_8, window_bounds = array<i64: 1, 64>}, {pipeline_mode = #tpu.pipeline_mode<synchronous>, transform_indices = @transform_9, window_bounds = array<i64: 64, 1>}, {pipeline_mode = #tpu.pipeline_mode<synchronous>, transform_indices = @transform_10, window_bounds = array<i64: 1, 1>}, {transform_indices = @transform_11, window_bounds = array<i64: 8, 1>}]} {
    %c0 = arith.constant 0 : index
    %c0_0 = arith.constant 0 : index
    %0 = vector.load %arg1[%c0, %c0_0] : memref<8x12xbf16, #tpu.memory_space<vmem>>, vector<8x12xbf16>
    %c0_1 = arith.constant 0 : index
    %c0_2 = arith.constant 0 : index
    %1 = vector.load %arg4[%c0_1, %c0_2] : memref<12x64xbf16, #tpu.memory_space<vmem>>, vector<12x64xbf16>
    %cst = arith.constant dense<0.000000e+00> : vector<8x64xf32>
    %2 = tpu.matmul %0, %1, %cst {dimension_numbers = #tpu.dot_dimension_numbers<[1], [0], [0], [1], [0, 0, 1, 1], [], []>} : vector<8x12xbf16>, vector<12x64xbf16>, vector<8x64xf32> -> vector<8x64xf32>
    %c0_3 = arith.constant 0 : index
    %c0_4 = arith.constant 0 : index
    %3 = vector.load %arg2[%c0_3, %c0_4] : memref<8x8xbf16, #tpu.memory_space<vmem>>, vector<8x8xbf16>
    %c0_5 = arith.constant 0 : index
    %c0_6 = arith.constant 0 : index
    %4 = vector.load %arg5[%c0_5, %c0_6] : memref<8x64xbf16, #tpu.memory_space<vmem>>, vector<8x64xbf16>
    %cst_7 = arith.constant dense<0.000000e+00> : vector<8x64xf32>
    %5 = tpu.matmul %3, %4, %cst_7 {dimension_numbers = #tpu.dot_dimension_numbers<[1], [0], [0], [1], [0, 0, 1, 1], [], []>} : vector<8x8xbf16>, vector<8x64xbf16>, vector<8x64xf32> -> vector<8x64xf32>
    %6 = arith.addf %2, %5 : vector<8x64xf32>
    %c0_8 = arith.constant 0 : index
    %c0_9 = arith.constant 0 : index
    %7 = vector.load %arg3[%c0_8, %c0_9] : memref<8x12xbf16, #tpu.memory_space<vmem>>, vector<8x12xbf16>
    %c0_10 = arith.constant 0 : index
    %c0_11 = arith.constant 0 : index
    %8 = vector.load %arg6[%c0_10, %c0_11] : memref<12x64xbf16, #tpu.memory_space<vmem>>, vector<12x64xbf16>
    %cst_12 = arith.constant dense<0.000000e+00> : vector<8x64xf32>
    %9 = tpu.matmul %7, %8, %cst_12 {dimension_numbers = #tpu.dot_dimension_numbers<[1], [0], [0], [1], [0, 0, 1, 1], [], []>} : vector<8x12xbf16>, vector<12x64xbf16>, vector<8x64xf32> -> vector<8x64xf32>
    %10 = arith.addf %6, %9 : vector<8x64xf32>
    %c0_13 = arith.constant 0 : index
    %c0_14 = arith.constant 0 : index
    %11 = vector.load %arg7[%c0_13, %c0_14] : memref<1x64xf32, #tpu.memory_space<vmem>>, vector<1x64xf32>
    %12 = vector.broadcast %11 : vector<1x64xf32> to vector<8x64xf32>
    %13 = arith.addf %10, %12 : vector<8x64xf32>
    %cst_15 = arith.constant 0.000000e+00 : f32
    %14 = vector.broadcast %cst_15 : f32 to vector<8x64xf32>
    %15 = arith.maximumf %13, %14 : vector<8x64xf32>
    %16 = arith.truncf %15 : vector<8x64xf32> to vector<8x64xbf16>
    %c0_16 = arith.constant 0 : index
    %c0_17 = arith.constant 0 : index
    %17 = vector.load %arg8[%c0_16, %c0_17] : memref<64x64xbf16, #tpu.memory_space<vmem>>, vector<64x64xbf16>
    %cst_18 = arith.constant dense<0.000000e+00> : vector<8x64xf32>
    %18 = tpu.matmul %16, %17, %cst_18 {dimension_numbers = #tpu.dot_dimension_numbers<[1], [0], [0], [1], [0, 0, 1, 1], [], []>} : vector<8x64xbf16>, vector<64x64xbf16>, vector<8x64xf32> -> vector<8x64xf32>
    %c0_19 = arith.constant 0 : index
    %c0_20 = arith.constant 0 : index
    %19 = vector.load %arg9[%c0_19, %c0_20] : memref<1x64xf32, #tpu.memory_space<vmem>>, vector<1x64xf32>
    %20 = vector.broadcast %19 : vector<1x64xf32> to vector<8x64xf32>
    %21 = arith.addf %18, %20 : vector<8x64xf32>
    %cst_21 = arith.constant 0.000000e+00 : f32
    %22 = vector.broadcast %cst_21 : f32 to vector<8x64xf32>
    %23 = arith.maximumf %21, %22 : vector<8x64xf32>
    %24 = arith.truncf %23 : vector<8x64xf32> to vector<8x64xbf16>
    %c0_22 = arith.constant 0 : index
    %c0_23 = arith.constant 0 : index
    %25 = vector.load %arg10[%c0_22, %c0_23] : memref<64x1xbf16, #tpu.memory_space<vmem>>, vector<64x1xbf16>
    %cst_24 = arith.constant dense<0.000000e+00> : vector<8x1xf32>
    %26 = tpu.matmul %24, %25, %cst_24 {dimension_numbers = #tpu.dot_dimension_numbers<[1], [0], [0], [1], [0, 0, 1, 1], [], []>} : vector<8x64xbf16>, vector<64x1xbf16>, vector<8x1xf32> -> vector<8x1xf32>
    %c0_25 = arith.constant 0 : index
    %c0_26 = arith.constant 0 : index
    %27 = vector.load %arg11[%c0_25, %c0_26] : memref<1x1xf32, #tpu.memory_space<vmem>>, vector<1x1xf32>
    %28 = vector.broadcast %27 : vector<1x1xf32> to vector<8x1xf32>
    %29 = arith.addf %26, %28 : vector<8x1xf32>
    %30 = arith.negf %29 : vector<8x1xf32>
    %31 = math.exp %30 : vector<8x1xf32>
    %cst_27 = arith.constant 1.000000e+00 : f32
    %32 = vector.broadcast %cst_27 : f32 to vector<8x1xf32>
    %33 = arith.addf %32, %31 : vector<8x1xf32>
    %34 = arith.divf %32, %33 : vector<8x1xf32>
    %cst_28 = arith.constant 0.000000e+00 : f32
    %35 = vector.broadcast %cst_28 : f32 to vector<8x1xf32>
    %36 = arith.subf %35, %34 : vector<8x1xf32>
    %cst_29 = arith.constant 1.000000e+01 : f32
    %37 = vector.broadcast %cst_29 : f32 to vector<8x1xf32>
    %38 = arith.mulf %36, %37 : vector<8x1xf32>
    %c0_30 = arith.constant 0 : index
    %c0_31 = arith.constant 0 : index
    %39 = vector.load %arg12[%c0_30, %c0_31] : memref<8x1xf32, #tpu.memory_space<vmem>>, vector<8x1xf32>
    tpu.vector_store %arg12[%c0_30, %c0_31], %38 {strides = array<i32>} : memref<8x1xf32, #tpu.memory_space<vmem>>, vector<8x1xf32>,
    return
  }
  func.func @transform_0(%arg0: i32) -> (i32, i32) {
    %c0_i32 = arith.constant 0 : i32
    %c0_i32_0 = arith.constant 0 : i32
    return %arg0, %c0_i32 : i32, i32
  }
  func.func @transform_1(%arg0: i32) -> (i32, i32) {
    %c0_i32 = arith.constant 0 : i32
    %c0_i32_0 = arith.constant 0 : i32
    return %arg0, %c0_i32 : i32, i32
  }
  func.func @transform_2(%arg0: i32) -> (i32, i32) {
    %c0_i32 = arith.constant 0 : i32
    %c0_i32_0 = arith.constant 0 : i32
    return %arg0, %c0_i32 : i32, i32
  }
  func.func @transform_3(%arg0: i32) -> (i32, i32) {
    %c0_i32 = arith.constant 0 : i32
    %c0_i32_0 = arith.constant 0 : i32
    %c0_i32_1 = arith.constant 0 : i32
    return %c0_i32, %c0_i32_0 : i32, i32
  }
  func.func @transform_4(%arg0: i32) -> (i32, i32) {
    %c0_i32 = arith.constant 0 : i32
    %c0_i32_0 = arith.constant 0 : i32
    %c0_i32_1 = arith.constant 0 : i32
    return %c0_i32, %c0_i32_0 : i32, i32
  }
  func.func @transform_5(%arg0: i32) -> (i32, i32) {
    %c0_i32 = arith.constant 0 : i32
    %c0_i32_0 = arith.constant 0 : i32
    %c0_i32_1 = arith.constant 0 : i32
    return %c0_i32, %c0_i32_0 : i32, i32
  }
  func.func @transform_6(%arg0: i32) -> (i32, i32) {
    %c0_i32 = arith.constant 0 : i32
    %c0_i32_0 = arith.constant 0 : i32
    %c0_i32_1 = arith.constant 0 : i32
    return %c0_i32, %c0_i32_0 : i32, i32
  }
  func.func @transform_7(%arg0: i32) -> (i32, i32) {
    %c0_i32 = arith.constant 0 : i32
    %c0_i32_0 = arith.constant 0 : i32
    %c0_i32_1 = arith.constant 0 : i32
    return %c0_i32, %c0_i32_0 : i32, i32
  }
  func.func @transform_8(%arg0: i32) -> (i32, i32) {
    %c0_i32 = arith.constant 0 : i32
    %c0_i32_0 = arith.constant 0 : i32
    %c0_i32_1 = arith.constant 0 : i32
    return %c0_i32, %c0_i32_0 : i32, i32
  }
  func.func @transform_9(%arg0: i32) -> (i32, i32) {
    %c0_i32 = arith.constant 0 : i32
    %c0_i32_0 = arith.constant 0 : i32
    %c0_i32_1 = arith.constant 0 : i32
    return %c0_i32, %c0_i32_0 : i32, i32
  }
  func.func @transform_10(%arg0: i32) -> (i32, i32) {
    %c0_i32 = arith.constant 0 : i32
    %c0_i32_0 = arith.constant 0 : i32
    %c0_i32_1 = arith.constant 0 : i32
    return %c0_i32, %c0_i32_0 : i32, i32
  }
  func.func @transform_11(%arg0: i32) -> (i32, i32) {
    %c0_i32 = arith.constant 0 : i32
    %c0_i32_0 = arith.constant 0 : i32
    return %arg0, %c0_i32 : i32, i32
  }
}

</mosaic_0001>

<llo_original>
// kernel: critic_forward.1
$region0: #{critic_forward.1}
  #allocation0 [shape = 'u32[]', space=smem, size = 0x4, offset = 0x4, fixed_abs, tag = 'smem constant byte address 0x4 - core index']
  #allocation1 [shape = 'u32[144,128]{1,0:T(1,128)}', space=vmem, size = 0x12000, scoped, tag = 'internal scratch']
  #allocation2 [shape = 'f32[1,1]{1,0:T(1,128)S(1)}', space=vmem, size = 0x200, scoped, tag = 'scoped memory for critic_forward.1']
  %s0 = inlined_call_operand.vmem [shape: bf16[8,12], index: 0, kind: input, shape index: {}]
  %s1 = inlined_call_operand.vmem [shape: bf16[8,8], index: 1, kind: input, shape index: {}]
  %s2 = inlined_call_operand.vmem [shape: bf16[8,12], index: 2, kind: input, shape index: {}]
  %s3 = inlined_call_operand.vmem [shape: bf16[12,64], index: 3, kind: input, shape index: {}]
  %s4 = inlined_call_operand.vmem [shape: bf16[8,64], index: 4, kind: input, shape index: {}]
  %s5 = inlined_call_operand.vmem [shape: bf16[12,64], index: 5, kind: input, shape index: {}]
  %s6 = inlined_call_operand.vmem [shape: f32[1,64], index: 6, kind: input, shape index: {}]
  %s7 = inlined_call_operand.vmem [shape: bf16[64,64], index: 7, kind: input, shape index: {}]
  %s8 = inlined_call_operand.vmem [shape: f32[1,64], index: 8, kind: input, shape index: {}]
  %s9 = inlined_call_operand.vmem [shape: bf16[64,1], index: 9, kind: input, shape index: {}]
  %s10 = inlined_call_operand.<no memory space> [shape: f32[1,1], index: 10, kind: input, shape index: {}]
  %s11 = inlined_call_operand.vmem [shape: f32[8,1], index: 11, kind: output, shape index: {}]
  %s12 = sld [smem:[#allocation0]]
  $region54: #{critic_forward.1} parent=0
    _
  %s14 = ssub.s32 1, %s12
  %s15 = scalar_select 0, %s14, %s12
  %v16 = vstv %s10
  %17 = vst [vmem:[#allocation2] sm:$0x1] %v16
  // Predicated region
  $region2: #{critic_forward.1} parent=0 // pred_check
    _
  $region3: #{critic_forward.1} parent=0 // pred_check_branch
    %19 = sbr.rel (0) target = $region5
  $region4: #{critic_forward.1} parent=0 // pred_region
    _
  $region5: #{critic_forward.1} parent=0 // pred_fallthru
    _
  // Predicated region
  $region6: #{critic_forward.1} parent=0 // pred_check
    _
  $region7: #{critic_forward.1} parent=0 // pred_check_branch
    %21 = sbr.rel (0) target = $region9
  $region8: #{critic_forward.1} parent=0 // pred_region
    _
  $region9: #{critic_forward.1} parent=0 // pred_fallthru
    _
  // Predicated region
  $region10: #{critic_forward.1} parent=0 // pred_check
    _
  $region11: #{critic_forward.1} parent=0 // pred_check_branch
    %23 = sbr.rel (0) target = $region13
  $region12: #{critic_forward.1} parent=0 // pred_region
    _
  $region13: #{critic_forward.1} parent=0 // pred_fallthru
    _
  // Predicated region
  $region14: #{critic_forward.1} parent=0 // pred_check
    _
  $region15: #{critic_forward.1} parent=0 // pred_check_branch
    %25 = sbr.rel (0) target = $region17
  $region16: #{critic_forward.1} parent=0 // pred_region
    _
  $region17: #{critic_forward.1} parent=0 // pred_fallthru
    _
  // Predicated region
  $region18: #{critic_forward.1} parent=0 // pred_check
    _
  $region19: #{critic_forward.1} parent=0 // pred_check_branch
    %27 = sbr.rel (0) target = $region21
  $region20: #{critic_forward.1} parent=0 // pred_region
    _
  $region21: #{critic_forward.1} parent=0 // pred_fallthru
    _
  // Predicated region
  $region22: #{critic_forward.1} parent=0 // pred_check
    _
  $region23: #{critic_forward.1} parent=0 // pred_check_branch
    %29 = sbr.rel (0) target = $region25
  $region24: #{critic_forward.1} parent=0 // pred_region
    _
  $region25: #{critic_forward.1} parent=0 // pred_fallthru
    _
  // Predicated region
  $region26: #{critic_forward.1} parent=0 // pred_check
    _
  $region27: #{critic_forward.1} parent=0 // pred_check_branch
    %31 = sbr.rel (0) target = $region29
  $region28: #{critic_forward.1} parent=0 // pred_region
    _
  $region29: #{critic_forward.1} parent=0 // pred_fallthru
    _
  // Predicated region
  $region30: #{critic_forward.1} parent=0 // pred_check
    _
  $region31: #{critic_forward.1} parent=0 // pred_check_branch
    %33 = sbr.rel (0) target = $region33
  $region32: #{critic_forward.1} parent=0 // pred_region
    _
  $region33: #{critic_forward.1} parent=0 // pred_fallthru
    _
  // Predicated region
  $region34: #{critic_forward.1} parent=0 // pred_check
    _
  $region35: #{critic_forward.1} parent=0 // pred_check_branch
    %35 = sbr.rel (0) target = $region37
  $region36: #{critic_forward.1} parent=0 // pred_region
    _
  $region37: #{critic_forward.1} parent=0 // pred_fallthru
    _
  // Predicated region
  $region38: #{critic_forward.1} parent=0 // pred_check
    _
  $region39: #{critic_forward.1} parent=0 // pred_check_branch
    %37 = sbr.rel (0) target = $region41
  $region40: #{critic_forward.1} parent=0 // pred_region
    _
  $region41: #{critic_forward.1} parent=0 // pred_fallthru
    _
  // Predicated region
  $region42: #{critic_forward.1} parent=0 // pred_check
    _
  $region43: #{critic_forward.1} parent=0 // pred_check_branch
    %39 = sbr.rel (0) target = $region45
  $region44: #{critic_forward.1} parent=0 // pred_region
    _
  $region45: #{critic_forward.1} parent=0 // pred_fallthru
    _
  %v41 = vld [vmem:[%s0] sm:$0xf]
  %v42 = vld [vmem:[%s3] sm:$0xf]
  %v43 = vld [vmem:[%s3 + $0x4] sm:$0x3]
  %v44 = vld [vmem:[%s1] sm:$0xf]
  %v45 = vld [vmem:[%s4] sm:$0xf]
  %vm46 = vcmask 64512
  %v48 = vsel %vm46, %v44, 0
  %vm50 = vcmask 1043456
  %v52 = vsel %vm50, %v45, 0
  %54 = vmatprep.subr.bf16.mxu0 0
  %55 = vmatpush1.bf16.msra.mxu0 0
  %56 = vmatprep.subr.bf16.mxu0 0
  %57 = vmatpush1.bf16.msra.mxu0 0
  %58 = vmatprep.subr.bf16.mxu0 0
  %59 = vmatpush1.bf16.msra.mxu0 0
  %60 = vmatprep.subr.bf16.mxu0 0
  %61 = vmatpush1.bf16.msra.mxu0 0
  %62 = vmatprep.subr.bf16.mxu0 0
  %63 = vmatpush1.bf16.msra.mxu0 0
  %64 = vmatprep.subr.bf16.mxu0 0
  %65 = vmatpush1.bf16.msra.mxu0 0
  %66 = vmatprep.subr.bf16.mxu0 0
  %67 = vmatpush1.bf16.msra.mxu0 0
  %68 = vmatprep.subr.bf16.mxu0 0
  %69 = vmatpush1.bf16.msra.mxu0 %v52
  %70 = vmatprep.subr.bf16.mxu0 0
  %71 = vmatpush2.bf16.msra.mxu0 0
  %72 = vmatprep.subr.bf16.mxu0 0
  %73 = vmatpush2.bf16.msra.mxu0 0
  %74 = vmatprep.subr.bf16.mxu0 0
  %75 = vmatpush2.bf16.msra.mxu0 0
  %76 = vmatprep.subr.bf16.mxu0 0
  %77 = vmatpush2.bf16.msra.mxu0 0
  %78 = vmatprep.subr.bf16.mxu0 0
  %79 = vmatpush2.bf16.msra.mxu0 0
  %80 = vmatprep.subr.bf16.mxu0 0
  %81 = vmatpush2.bf16.msra.mxu0 0
  %82 = vmatprep.subr.bf16.mxu0 0
  %83 = vmatpush2.bf16.msra.mxu0 0
  %84 = vmatprep.subr.bf16.mxu0 0
  %85 = vmatpush2.bf16.msra.mxu0 0
  %86 = vmatprep.mubr.bf16.mxu0 0
  %87 = vmatmul.mubr.bf16.gmra.mxu0 %v48
  %v88 = vpop.f32.mrf.mxu0
  %v89 = vadd.f32 0.0, %v88
  %v90 = vpop.f32.mrf.mxu0
  %v91 = vpop.f32.mrf.mxu0
  %v92 = vpop.f32.mrf.mxu0
  %93 = vdwg.mxu0
  %v96 = vunpack.c.l.b16 %v42
  %v97 = vunpack.c.l.b16 %v43
  %v98 = vpack.c.b16 %v97, %v96
  %vm99 = vcmask 97280
  %v101 = vsel %vm99, %v41, 0
  %vm103 = vcmask 1045504
  %v105 = vsel %vm103, %v98, 0
  %107 = vmatprep.subr.bf16.mxu0 0
  %108 = vmatpush1.bf16.msra.mxu0 0
  %109 = vmatprep.subr.bf16.mxu0 0
  %110 = vmatpush1.bf16.msra.mxu0 0
  %111 = vmatprep.subr.bf16.mxu0 0
  %112 = vmatpush1.bf16.msra.mxu0 0
  %113 = vmatprep.subr.bf16.mxu0 0
  %114 = vmatpush1.bf16.msra.mxu0 0
  %115 = vmatprep.subr.bf16.mxu0 0
  %116 = vmatpush1.bf16.msra.mxu0 0
  %117 = vmatprep.subr.bf16.mxu0 0
  %118 = vmatpush1.bf16.msra.mxu0 0
  %119 = vmatprep.subr.bf16.mxu0 0
  %120 = vmatpush1.bf16.msra.mxu0 0
  %121 = vmatprep.subr.bf16.mxu0 0
  %122 = vmatpush1.bf16.msra.mxu0 %v105
  %123 = vmatprep.subr.bf16.mxu0 0
  %124 = vmatpush2.bf16.msra.mxu0 0
  %125 = vmatprep.subr.bf16.mxu0 0
  %126 = vmatpush2.bf16.msra.mxu0 0
  %127 = vmatprep.subr.bf16.mxu0 0
  %128 = vmatpush2.bf16.msra.mxu0 0
  %129 = vmatprep.subr.bf16.mxu0 0
  %130 = vmatpush2.bf16.msra.mxu0 0
  %131 = vmatprep.subr.bf16.mxu0 0
  %132 = vmatpush2.bf16.msra.mxu0 0
  %133 = vmatprep.subr.bf16.mxu0 0
  %134 = vmatpush2.bf16.msra.mxu0 0
  %135 = vmatprep.subr.bf16.mxu0 0
  %136 = vmatpush2.bf16.msra.mxu0 0
  %137 = vmatprep.subr.bf16.mxu0 0
  %138 = vmatpush2.bf16.msra.mxu0 0
  %139 = vmatprep.mubr.bf16.mxu0 0
  %140 = vmatmul.mubr.bf16.gmra.mxu0 %v101
  %v141 = vpop.f32.mrf.mxu0
  %v142 = vadd.f32 %v89, %v141
  %v143 = vpop.f32.mrf.mxu0
  %v144 = vpop.f32.mrf.mxu0
  %v145 = vpop.f32.mrf.mxu0
  %146 = vdwg.mxu0
  %v147 = vld [vmem:[%s2] sm:$0xf]
  %v148 = vld [vmem:[%s5] sm:$0xf]
  %v149 = vld [vmem:[%s5 + $0x4] sm:$0x3]
  %v152 = vunpack.c.l.b16 %v148
  %v153 = vunpack.c.l.b16 %v149
  %v154 = vpack.c.b16 %v153, %v152
  %v156 = vsel %vm99, %v147, 0
  %v159 = vsel %vm103, %v154, 0
  %161 = vmatprep.subr.bf16.mxu0 0
  %162 = vmatpush1.bf16.msra.mxu0 0
  %163 = vmatprep.subr.bf16.mxu0 0
  %164 = vmatpush1.bf16.msra.mxu0 0
  %165 = vmatprep.subr.bf16.mxu0 0
  %166 = vmatpush1.bf16.msra.mxu0 0
  %167 = vmatprep.subr.bf16.mxu0 0
  %168 = vmatpush1.bf16.msra.mxu0 0
  %169 = vmatprep.subr.bf16.mxu0 0
  %170 = vmatpush1.bf16.msra.mxu0 0
  %171 = vmatprep.subr.bf16.mxu0 0
  %172 = vmatpush1.bf16.msra.mxu0 0
  %173 = vmatprep.subr.bf16.mxu0 0
  %174 = vmatpush1.bf16.msra.mxu0 0
  %175 = vmatprep.subr.bf16.mxu0 0
  %176 = vmatpush1.bf16.msra.mxu0 %v159
  %177 = vmatprep.subr.bf16.mxu0 0
  %178 = vmatpush2.bf16.msra.mxu0 0
  %179 = vmatprep.subr.bf16.mxu0 0
  %180 = vmatpush2.bf16.msra.mxu0 0
  %181 = vmatprep.subr.bf16.mxu0 0
  %182 = vmatpush2.bf16.msra.mxu0 0
  %183 = vmatprep.subr.bf16.mxu0 0
  %184 = vmatpush2.bf16.msra.mxu0 0
  %185 = vmatprep.subr.bf16.mxu0 0
  %186 = vmatpush2.bf16.msra.mxu0 0
  %187 = vmatprep.subr.bf16.mxu0 0
  %188 = vmatpush2.bf16.msra.mxu0 0
  %189 = vmatprep.subr.bf16.mxu0 0
  %190 = vmatpush2.bf16.msra.mxu0 0
  %191 = vmatprep.subr.bf16.mxu0 0
  %192 = vmatpush2.bf16.msra.mxu0 0
  %193 = vmatprep.mubr.bf16.mxu0 0
  %194 = vmatmul.mubr.bf16.gmra.mxu0 %v156
  %v195 = vpop.f32.mrf.mxu0
  %v196 = vadd.f32 0.0, %v195
  %v197 = vpop.f32.mrf.mxu0
  %v198 = vpop.f32.mrf.mxu0
  %v199 = vpop.f32.mrf.mxu0
  %200 = vdwg.mxu0
  %v201 = vadd.f32 %v142, %v196
  %v202 = vld [vmem:[%s6] sm:$0x1]
  %v204 = vlaneseq
  %v205 = vshrl.u32 %v204, 7
  %v206 = vsub.s32 0, %v205
  %v207 = vrot.slane %v202, %v206
  %v209 = vadd.f32 %v201, %v207
  %v210 = vmax.f32 %v209, 0.0
  %v211 = vpack.c.bf16 %v210, %v210
  %v212 = vld [vmem:[%s7] sm:$0xf]
  %v213 = vld [vmem:[%s7 + $0x4] sm:$0xf]
  %v214 = vld [vmem:[%s7 + $0x8] sm:$0xf]
  %v215 = vld [vmem:[%s7 + $0xc] sm:$0xf]
  %v216 = vld [vmem:[%s7 + $0x10] sm:$0xf]
  %v217 = vld [vmem:[%s7 + $0x14] sm:$0xf]
  %v218 = vld [vmem:[%s7 + $0x18] sm:$0xf]
  %v219 = vld [vmem:[%s7 + $0x1c] sm:$0xf]
  %v220 = vld [vmem:[%s8] sm:$0x1]
  %v222 = vlaneseq
  %v223 = vshrl.u32 %v222, 7
  %v224 = vsub.s32 0, %v223
  %v225 = vrot.slane %v220, %v224
  %v235 = vunpack.c.l.b16 %v212
  %v236 = vunpack.c.l.b16 %v213
  %v237 = vunpack.c.l.b16 %v214
  %v238 = vunpack.c.l.b16 %v215
  %v239 = vunpack.c.l.b16 %v216
  %v240 = vunpack.c.l.b16 %v217
  %v241 = vunpack.c.l.b16 %v218
  %v242 = vunpack.c.l.b16 %v219
  %v243 = vpack.c.b16 %v236, %v235
  %v244 = vpack.c.b16 %v238, %v237
  %v245 = vpack.c.b16 %v240, %v239
  %v246 = vpack.c.b16 %v242, %v241
  %vm251 = vcmask 523264
  %v253 = vsel %vm251, %v211, 0
  %255 = vmatprep.subr.bf16.mxu0 0
  %256 = vmatpush1.bf16.msra.mxu0 0
  %257 = vmatprep.subr.bf16.mxu0 0
  %258 = vmatpush1.bf16.msra.mxu0 0
  %259 = vmatprep.subr.bf16.mxu0 0
  %260 = vmatpush1.bf16.msra.mxu0 0
  %261 = vmatprep.subr.bf16.mxu0 0
  %262 = vmatpush1.bf16.msra.mxu0 0
  %263 = vmatprep.subr.bf16.mxu0 0
  %264 = vmatpush1.bf16.msra.mxu0 %v246
  %265 = vmatprep.subr.bf16.mxu0 0
  %266 = vmatpush1.bf16.msra.mxu0 %v245
  %267 = vmatprep.subr.bf16.mxu0 0
  %268 = vmatpush1.bf16.msra.mxu0 %v244
  %269 = vmatprep.subr.bf16.mxu0 0
  %270 = vmatpush1.bf16.msra.mxu0 %v243
  %271 = vmatprep.subr.bf16.mxu0 0
  %272 = vmatpush2.bf16.msra.mxu0 0
  %273 = vmatprep.subr.bf16.mxu0 0
  %274 = vmatpush2.bf16.msra.mxu0 0
  %275 = vmatprep.subr.bf16.mxu0 0
  %276 = vmatpush2.bf16.msra.mxu0 0
  %277 = vmatprep.subr.bf16.mxu0 0
  %278 = vmatpush2.bf16.msra.mxu0 0
  %279 = vmatprep.subr.bf16.mxu0 0
  %280 = vmatpush2.bf16.msra.mxu0 0
  %281 = vmatprep.subr.bf16.mxu0 0
  %282 = vmatpush2.bf16.msra.mxu0 0
  %283 = vmatprep.subr.bf16.mxu0 0
  %284 = vmatpush2.bf16.msra.mxu0 0
  %285 = vmatprep.subr.bf16.mxu0 0
  %286 = vmatpush2.bf16.msra.mxu0 0
  %287 = vmatprep.mubr.bf16.mxu0 0
  %288 = vmatmul.mubr.bf16.gmra.mxu0 %v253
  %v289 = vpop.f32.mrf.mxu0
  %v290 = vadd.f32 %v225, %v289
  %v291 = vpop.f32.mrf.mxu0
  %v292 = vpop.f32.mrf.mxu0
  %v293 = vpop.f32.mrf.mxu0
  %294 = vdwg.mxu0
  %v295 = vmax.f32 %v290, 0.0
  %v296 = vpack.c.bf16 %v295, %v295
  %v297 = vld [vmem:[%s9] sm:$0xf]
  %v298 = vld [vmem:[%s9 + $0x4] sm:$0xf]
  %v299 = vld [vmem:[%s9 + $0x8] sm:$0xf]
  %v300 = vld [vmem:[%s9 + $0xc] sm:$0xf]
  %v301 = vld [vmem:[%s9 + $0x10] sm:$0xf]
  %v302 = vld [vmem:[%s9 + $0x14] sm:$0xf]
  %v303 = vld [vmem:[%s9 + $0x18] sm:$0xf]
  %v304 = vld [vmem:[%s9 + $0x1c] sm:$0xf]
  %v305 = vld [vmem:[#allocation2] sm:$0x1]
  %v307 = vlaneseq
  %v308 = vshrl.u32 %v307, 7
  %v309 = vsub.s32 0, %v308
  %v310 = vrot.slane %v305, %v309
  %v320 = vunpack.c.l.b16 %v297
  %v321 = vunpack.c.l.b16 %v298
  %v322 = vunpack.c.l.b16 %v299
  %v323 = vunpack.c.l.b16 %v300
  %v324 = vunpack.c.l.b16 %v301
  %v325 = vunpack.c.l.b16 %v302
  %v326 = vunpack.c.l.b16 %v303
  %v327 = vunpack.c.l.b16 %v304
  %v328 = vpack.c.b16 %v321, %v320
  %v329 = vpack.c.b16 %v323, %v322
  %v330 = vpack.c.b16 %v325, %v324
  %v331 = vpack.c.b16 %v327, %v326
  %v337 = vsel %vm251, %v296, 0
  %339 = vmatprep.subr.bf16.mxu0 0
  %340 = vmatpush1.bf16.msra.mxu0 0
  %341 = vmatprep.subr.bf16.mxu0 0
  %342 = vmatpush1.bf16.msra.mxu0 0
  %343 = vmatprep.subr.bf16.mxu0 0
  %344 = vmatpush1.bf16.msra.mxu0 0
  %345 = vmatprep.subr.bf16.mxu0 0
  %346 = vmatpush1.bf16.msra.mxu0 0
  %347 = vmatprep.subr.bf16.mxu0 0
  %348 = vmatpush1.bf16.msra.mxu0 %v331
  %349 = vmatprep.subr.bf16.mxu0 0
  %350 = vmatpush1.bf16.msra.mxu0 %v330
  %351 = vmatprep.subr.bf16.mxu0 0
  %352 = vmatpush1.bf16.msra.mxu0 %v329
  %353 = vmatprep.subr.bf16.mxu0 0
  %354 = vmatpush1.bf16.msra.mxu0 %v328
  %355 = vmatprep.subr.bf16.mxu0 0
  %356 = vmatpush2.bf16.msra.mxu0 0
  %357 = vmatprep.subr.bf16.mxu0 0
  %358 = vmatpush2.bf16.msra.mxu0 0
  %359 = vmatprep.subr.bf16.mxu0 0
  %360 = vmatpush2.bf16.msra.mxu0 0
  %361 = vmatprep.subr.bf16.mxu0 0
  %362 = vmatpush2.bf16.msra.mxu0 0
  %363 = vmatprep.subr.bf16.mxu0 0
  %364 = vmatpush2.bf16.msra.mxu0 0
  %365 = vmatprep.subr.bf16.mxu0 0
  %366 = vmatpush2.bf16.msra.mxu0 0
  %367 = vmatprep.subr.bf16.mxu0 0
  %368 = vmatpush2.bf16.msra.mxu0 0
  %369 = vmatprep.subr.bf16.mxu0 0
  %370 = vmatpush2.bf16.msra.mxu0 0
  %371 = vmatprep.mubr.bf16.mxu0 0
  %372 = vmatmul.mubr.bf16.gmra.mxu0 %v337
  %v373 = vpop.f32.mrf.mxu0
  %v374 = vadd.f32 %v310, %v373
  %v375 = vpop.f32.mrf.mxu0
  %v376 = vpop.f32.mrf.mxu0
  %v377 = vpop.f32.mrf.mxu0
  %378 = vdwg.mxu0
  %v379 = vxor.u32 %v374, 2147483648
  %v380 = vmul.f32 %v379, 1.442695
  %v381 = vpow.pop %v380
  %v382 = vadd.f32 %v381, 1.0
  %v383 = vrcp.pop %v382
  %v384 = vmul.f32 1.0, %v383
  %v385 = vsub.f32 0.0, %v384
  %v386 = vmul.f32 %v385, 10.0
  %vm387 = vcmask 7168
  %388 = vst.msk [vmem:[%s11] sm:$0xff] %vm387, %v386
  // Predicated region
  $region46: #{critic_forward.1} parent=0 // pred_check
    _
  $region47: #{critic_forward.1} parent=0 // pred_check_branch
    %390 = sbr.rel (0) target = $region49
  $region48: #{critic_forward.1} parent=0 // pred_region
    _
  $region49: #{critic_forward.1} parent=0 // pred_fallthru
    _
  // Predicated region
  $region50: #{critic_forward.1} parent=0 // pred_check
    _
  $region51: #{critic_forward.1} parent=0 // pred_check_branch
    %392 = sbr.rel (0) target = $region53
  $region52: #{critic_forward.1} parent=0 // pred_region
    _
  $region53: #{critic_forward.1} parent=0 // pred_fallthru
    _

</llo_original>
